<compile_context>
chip_gen: v7x
topology: tpu7x:2x2x1
jax: 0.10.0
libtpu: 0.0.40
codegen_flags: <defaults>
</compile_context>

<pallas_src>
import jax
import jax.numpy as jnp
from jax.experimental import pallas as pl
from jax.experimental.pallas import tpu as pltpu


# ----------------------------- small config ---------------------------------
BATCH = 2
CHANNELS = 3
IMAGE_SIZE = 16
PATCH_SIZE = 4
HIDDEN = 32

NUM_PATCHES = (IMAGE_SIZE // PATCH_SIZE) ** 2          # 16
PATCH_DIM = CHANNELS * PATCH_SIZE * PATCH_SIZE         # 48


# ------------------------------- kernel -------------------------------------
def embeddings_kernel(patches_ref, w_ref, posb_ref, out_ref):
    """One batch element per grid step.

    patches_ref : (1, N, K)  im2col'd pixel patches
    w_ref       : (K, E)     flattened conv weight (in, out)
    posb_ref    : (N, E)     position embeddings with conv bias pre-folded in
    out_ref     : (1, N, E)
    """
    y = jnp.dot(patches_ref[0], w_ref[...],
                preferred_element_type=jnp.float32)        # (N, E) on the MXU
    out_ref[0] = (y + posb_ref[...]).astype(out_ref.dtype)


# ------------------------------- wrapper -------------------------------------
def siglip_visual_embeddings_pallas(pixel_values, conv_w, conv_b, pos_emb, *,
                                    patch_size):
    """pixel_values: (B, C, H, W) f32
       conv_w:       (E, C, P, P) f32   (PyTorch nn.Conv2d layout)
       conv_b:       (E,)         f32
       pos_emb:      (N, E)       f32   (nn.Embedding weight)
    """
    B, C, H, W = pixel_values.shape
    E = conv_w.shape[0]
    P = patch_size
    Hp, Wp = H // P, W // P
    N = Hp * Wp
    K = C * P * P

    # im2col: (B, C, H, W) -> (B, N, C*P*P), ordered (c, ph, pw) to match the
    # flattened conv weight.  Pure layout, done once outside the kernel.
    patches = (pixel_values
               .reshape(B, C, Hp, P, Wp, P)
               .transpose(0, 2, 4, 1, 3, 5)
               .reshape(B, N, K))

    # Conv weight as a (in, out) matmul operand; fold the conv bias into the
    # position-embedding table (one-time host-side parameter transform).
    w_mat = conv_w.reshape(E, K).T                       # (K, E)
    pos_bias = pos_emb + conv_b[None, :]                 # (N, E)

    return pl.pallas_call(
        embeddings_kernel,
        out_shape=jax.ShapeDtypeStruct((B, N, E), pixel_values.dtype),
        grid=(B,),
        in_specs=[
            pl.BlockSpec((1, N, K), lambda b: (b, 0, 0)),   # per-batch patches
            pl.BlockSpec((K, E), lambda b: (0, 0)),          # weight, resident
            pl.BlockSpec((N, E), lambda b: (0, 0)),          # pos+bias, resident
        ],
        out_specs=pl.BlockSpec((1, N, E), lambda b: (b, 0, 0)),
        compiler_params=pltpu.CompilerParams(
            dimension_semantics=("parallel",)),             # 2-way on v7x's 2 TCs
    )(patches, w_mat, pos_bias)


# --------------------------- plain-JAX reference ------------------------------
def siglip_visual_embeddings_ref(pixel_values, conv_w, conv_b, pos_emb, *,
                                 patch_size):
    P = patch_size
    out = jax.lax.conv_general_dilated(
        pixel_values, conv_w, window_strides=(P, P), padding="VALID",
        dimension_numbers=("NCHW", "OIHW", "NCHW"))
    out = out + conv_b[None, :, None, None]               # (B, E, Hp, Wp)
    B, E, Hp, Wp = out.shape
    emb = out.reshape(B, E, Hp * Wp).transpose(0, 2, 1)    # flatten(2).transpose(1,2)
    return emb + pos_emb[None, :, :]


# --------------------------------- main ---------------------------------------
if __name__ == "__main__":
    key = jax.random.PRNGKey(0)
    k_x, k_w, k_b, k_p = jax.random.split(key, 4)

    pixel_values = jax.random.normal(
        k_x, (BATCH, CHANNELS, IMAGE_SIZE, IMAGE_SIZE), dtype=jnp.float32)
    conv_w = (0.02 * jax.random.normal(
        k_w, (HIDDEN, CHANNELS, PATCH_SIZE, PATCH_SIZE))).astype(jnp.float32)
    conv_b = (0.02 * jax.random.normal(k_b, (HIDDEN,))).astype(jnp.float32)
    pos_emb = (0.02 * jax.random.normal(
        k_p, (NUM_PATCHES, HIDDEN))).astype(jnp.float32)

    out = siglip_visual_embeddings_pallas(
        pixel_values, conv_w, conv_b, pos_emb, patch_size=PATCH_SIZE)
    out = jax.block_until_ready(out)

    ref = siglip_visual_embeddings_ref(
        pixel_values, conv_w, conv_b, pos_emb, patch_size=PATCH_SIZE)
    ref = jax.block_until_ready(ref)

    assert out.shape == (BATCH, NUM_PATCHES, HIDDEN), out.shape
    max_err = float(jnp.max(jnp.abs(out - ref)))
    assert jnp.allclose(out, ref, rtol=1e-4, atol=1e-5), max_err

    print("KERNEL_OK")
</pallas_src>

<mosaic_0001>
module attributes {stable_mosaic.version = 11 : i64} {
  func.func @embeddings_kernel(%arg0: i32, %arg1: memref<1x16x48xf32, #tpu.memory_space<vmem>>, %arg2: memref<48x32xf32, #tpu.memory_space<vmem>>, %arg3: memref<16x32xf32, #tpu.memory_space<vmem>>, %arg4: memref<1x16x32xf32, #tpu.memory_space<vmem>>) attributes {dimension_semantics = [#tpu.dimension_semantics<parallel>], iteration_bounds = array<i64: 2>, scalar_prefetch = 0 : i64, scratch_operands = 0 : i64, tpu.core_type = #tpu.core_type<tc>, window_params = [{transform_indices = @transform_0, window_bounds = array<i64: 1, 16, 48>}, {pipeline_mode = #tpu.pipeline_mode<synchronous>, transform_indices = @transform_1, window_bounds = array<i64: 48, 32>}, {pipeline_mode = #tpu.pipeline_mode<synchronous>, transform_indices = @transform_2, window_bounds = array<i64: 16, 32>}, {transform_indices = @transform_3, window_bounds = array<i64: 1, 16, 32>}]} {
    %c0 = arith.constant 0 : index
    %c0_0 = arith.constant 0 : index
    %c0_1 = arith.constant 0 : index
    %0 = vector.load %arg1[%c0, %c0_0, %c0_1] : memref<1x16x48xf32, #tpu.memory_space<vmem>>, vector<1x16x48xf32>
    %1 = vector.shape_cast %0 : vector<1x16x48xf32> to vector<16x48xf32>
    %c0_2 = arith.constant 0 : index
    %c0_3 = arith.constant 0 : index
    %2 = vector.load %arg2[%c0_2, %c0_3] : memref<48x32xf32, #tpu.memory_space<vmem>>, vector<48x32xf32>
    %cst = arith.constant dense<0.000000e+00> : vector<16x32xf32>
    %3 = tpu.matmul %1, %2, %cst {dimension_numbers = #tpu.dot_dimension_numbers<[1], [0], [0], [1], [0, 0, 1, 1], [], []>} : vector<16x48xf32>, vector<48x32xf32>, vector<16x32xf32> -> vector<16x32xf32>
    %c0_4 = arith.constant 0 : index
    %c0_5 = arith.constant 0 : index
    %4 = vector.load %arg3[%c0_4, %c0_5] : memref<16x32xf32, #tpu.memory_space<vmem>>, vector<16x32xf32>
    %5 = arith.addf %3, %4 : vector<16x32xf32>
    %c0_6 = arith.constant 0 : index
    %c0_7 = arith.constant 0 : index
    %c0_8 = arith.constant 0 : index
    %6 = vector.load %arg4[%c0_6, %c0_7, %c0_8] : memref<1x16x32xf32, #tpu.memory_space<vmem>>, vector<1x16x32xf32>
    %7 = vector.shape_cast %6 : vector<1x16x32xf32> to vector<16x32xf32>
    %8 = vector.shape_cast %5 : vector<16x32xf32> to vector<1x16x32xf32>
    tpu.vector_store %arg4[%c0_6, %c0_7, %c0_8], %8 {strides = array<i32>} : memref<1x16x32xf32, #tpu.memory_space<vmem>>, vector<1x16x32xf32>,
    return
  }
  func.func @transform_0(%arg0: i32) -> (i32, i32, i32) {
    %c0_i32 = arith.constant 0 : i32
    %c0_i32_0 = arith.constant 0 : i32
    %c0_i32_1 = arith.constant 0 : i32
    return %arg0, %c0_i32, %c0_i32_0 : i32, i32, i32
  }
  func.func @transform_1(%arg0: i32) -> (i32, i32) {
    %c0_i32 = arith.constant 0 : i32
    %c0_i32_0 = arith.constant 0 : i32
    %c0_i32_1 = arith.constant 0 : i32
    return %c0_i32, %c0_i32_0 : i32, i32
  }
  func.func @transform_2(%arg0: i32) -> (i32, i32) {
    %c0_i32 = arith.constant 0 : i32
    %c0_i32_0 = arith.constant 0 : i32
    %c0_i32_1 = arith.constant 0 : i32
    return %c0_i32, %c0_i32_0 : i32, i32
  }
  func.func @transform_3(%arg0: i32) -> (i32, i32, i32) {
    %c0_i32 = arith.constant 0 : i32
    %c0_i32_0 = arith.constant 0 : i32
    %c0_i32_1 = arith.constant 0 : i32
    return %arg0, %c0_i32, %c0_i32_0 : i32, i32, i32
  }
}

</mosaic_0001>

<llo_original>
// kernel: tpu_custom_call.1
$region0: #{tpu_custom_call.1}
  #allocation0 [shape = 'u32[]', space=smem, size = 0x4, offset = 0x4, fixed_abs, tag = 'smem constant byte address 0x4 - core index']
  #allocation1 [shape = 'u32[144,128]{1,0:T(1,128)}', space=vmem, size = 0x12000, scoped, tag = 'internal scratch']
  %s0 = inlined_call_operand.vmem [shape: f32[2,16,48], index: 0, kind: input, shape index: {}]
  %s1 = inlined_call_operand.vmem [shape: f32[48,32], index: 1, kind: input, shape index: {}]
  %s2 = inlined_call_operand.vmem [shape: f32[16,32], index: 2, kind: input, shape index: {}]
  %s3 = inlined_call_operand.hbm [shape: f32[2,16,32], index: 3, kind: output, shape index: {}]
  %s4 = sld [smem:[#allocation0]]
  $region45: #{tpu_custom_call.1} parent=0
    _
  %s6 = ssub.s32 1, %s4
  %s7 = scalar_select 0, %s6, %s4
  $region1: #{tpu_custom_call.1} parent=0
    #allocation2 [shape = 'u8[16384]{0}', space=vmem, size = 0x4000, scoped, tag = 'output window, operand 0']
    #allocation3 [shape = 's32[2]{0}', space=sflag, size = 0x8, scoped, tag = 'scoped memory for tpu_custom_call.1']
    %8 = vsyncpa [#allocation3], 0
    %s9 = scalar_lea.sflag [#allocation3], 1
    %10 = vsyncpa %s9, 0
    loop: start=0, step=1, limit=4
    $region2: #{tpu_custom_call.1} parent=1 // loop_pre_header
      _
    $region3: #{tpu_custom_call.1} parent=1 // loop_header
      %s12 = sphi 0, %s16
      %p13 = scmp.ge.s32.totalorder %s12, 4
      %s22 = sphi 0, %s24
      %s25 = sphi 0, %s22
      %s26 = sphi 0, %s25
      %s42 = sphi 0, %s26
      %s46 = sphi 0, %s46
      %s48 = sphi 0, %s46
      %s49 = sphi 0, %s48
      %s63 = sphi 0, %s49
      %s67 = sphi 0, %s67
      %s69 = sphi 0, %s67
      %s70 = sphi 0, %s69
      %s84 = sphi 0, %s70
      %s90 = sphi 0, %s92
      %s93 = sphi 0, %s90
      %s94 = sphi 0, %s93
      %s110 = sphi 0, %s94
    $region4: #{tpu_custom_call.1} parent=1 // loop_header_branch
      %15 = sbr.rel (%p13) target = $region8
    $region5: #{tpu_custom_call.1} parent=1 // loop_body
      %s17 = ssub.s32 %s12, 1
      %s18 = ssub.s32 %s12, 2
      %s19 = sadd.s32 %s12, 1
      %s20 = ssub.s32 %s12, %s19
      %p21 = scmp.eq.s32.totalorder %s20, 0
      %s23 = sadd.s32 %s22, 1
      %s24 = scalar_select %p21, %s22, %s23
      %p27 = pneg %p21
      %p28 = scmp.eq.s32.totalorder %s12, 1
      %p29 = por %p27, %p28
      %p30 = scmp.ne.s32.totalorder %s22, %s25
      %p31 = scmp.eq.s32.totalorder %s12, 0
      %p32 = por %p30, %p31
      %p33 = scmp.ne.s32.totalorder %s22, %s25
      %p34 = scmp.eq.s32.totalorder %s17, 1
      %p35 = por %p33, %p34
      %p36 = scmp.ne.s32.totalorder %s25, %s26
      %p37 = scmp.eq.s32.totalorder %s17, 0
      %p38 = por %p36, %p37
      %p39 = scmp.ne.s32.totalorder %s25, %s26
      %p40 = scmp.eq.s32.totalorder %s18, 1
      %p41 = por %p39, %p40
      %p43 = scmp.ne.s32.totalorder %s26, %s42
      %p44 = scmp.eq.s32.totalorder %s18, 0
      %p45 = por %p43, %p44
      %s47 = sadd.s32 %s46, 1
      %p50 = scmp.eq.s32.totalorder %s12, 1
      %p51 = scmp.ne.s32.totalorder %s46, %s48
      %p52 = scmp.eq.s32.totalorder %s12, 0
      %p53 = por %p51, %p52
      %p54 = scmp.ne.s32.totalorder %s46, %s48
      %p55 = scmp.eq.s32.totalorder %s17, 1
      %p56 = por %p54, %p55
      %p57 = scmp.ne.s32.totalorder %s48, %s49
      %p58 = scmp.eq.s32.totalorder %s17, 0
      %p59 = por %p57, %p58
      %p60 = scmp.ne.s32.totalorder %s48, %s49
      %p61 = scmp.eq.s32.totalorder %s18, 1
      %p62 = por %p60, %p61
      %p64 = scmp.ne.s32.totalorder %s49, %s63
      %p65 = scmp.eq.s32.totalorder %s18, 0
      %p66 = por %p64, %p65
      %s68 = sadd.s32 %s67, 1
      %p71 = scmp.eq.s32.totalorder %s12, 1
      %p72 = scmp.ne.s32.totalorder %s67, %s69
      %p73 = scmp.eq.s32.totalorder %s12, 0
      %p74 = por %p72, %p73
      %p75 = scmp.ne.s32.totalorder %s67, %s69
      %p76 = scmp.eq.s32.totalorder %s17, 1
      %p77 = por %p75, %p76
      %p78 = scmp.ne.s32.totalorder %s69, %s70
      %p79 = scmp.eq.s32.totalorder %s17, 0
      %p80 = por %p78, %p79
      %p81 = scmp.ne.s32.totalorder %s69, %s70
      %p82 = scmp.eq.s32.totalorder %s18, 1
      %p83 = por %p81, %p82
      %p85 = scmp.ne.s32.totalorder %s70, %s84
      %p86 = scmp.eq.s32.totalorder %s18, 0
      %p87 = por %p85, %p86
      %s88 = ssub.s32 %s12, %s19
      %p89 = scmp.eq.s32.totalorder %s88, 0
      %s91 = sadd.s32 %s90, 1
      %s92 = scalar_select %p89, %s90, %s91
      %p95 = pneg %p89
      %p96 = scmp.eq.s32.totalorder %s12, 1
      %p97 = por %p95, %p96
      %p98 = scmp.ne.s32.totalorder %s90, %s93
      %p99 = scmp.eq.s32.totalorder %s12, 0
      %p100 = por %p98, %p99
      %p101 = scmp.ne.s32.totalorder %s90, %s93
      %p102 = scmp.eq.s32.totalorder %s17, 1
      %p103 = por %p101, %p102
      %p104 = scmp.ne.s32.totalorder %s93, %s94
      %p105 = scmp.eq.s32.totalorder %s17, 0
      %p106 = por %p104, %p105
      %p107 = scmp.ne.s32.totalorder %s93, %s94
      %p108 = scmp.eq.s32.totalorder %s18, 1
      %p109 = por %p107, %p108
      %p111 = scmp.ne.s32.totalorder %s94, %s110
      %p112 = scmp.eq.s32.totalorder %s18, 0
      %p113 = por %p111, %p112
      %p114 = scmp.le.s32.totalorder 1, %s12
      %p115 = scmp.lt.s32.totalorder %s12, 3
      %p116 = pnand %p114, %p115
      %p117 = pneg %p116
      // Predicated region
      $region9: #{tpu_custom_call.1} parent=5 // pred_check
        _
      $region10: #{tpu_custom_call.1} parent=5 // pred_check_branch
        %119 = sbr.rel (%p116) target = $region12
      $region11: #{tpu_custom_call.1} parent=5 // pred_region
        %s120 = ssub.s32 %s12, 1
        // Predicated region
        $region13: #{tpu_custom_call.1} parent=11 // pred_check
          %p121 = pneg %p59
        $region14: #{tpu_custom_call.1} parent=11 // pred_check_branch
          %123 = sbr.rel (%p121) target = $region16
        $region15: #{tpu_custom_call.1} parent=11 // pred_region
          _
        $region16: #{tpu_custom_call.1} parent=11 // pred_fallthru
          _
        // Predicated region
        $region17: #{tpu_custom_call.1} parent=11 // pred_check
          %p124 = pneg %p80
        $region18: #{tpu_custom_call.1} parent=11 // pred_check_branch
          %126 = sbr.rel (%p124) target = $region20
        $region19: #{tpu_custom_call.1} parent=11 // pred_region
          _
        $region20: #{tpu_custom_call.1} parent=11 // pred_fallthru
          _
      $region12: #{tpu_custom_call.1} parent=5 // pred_fallthru
        _
      %p127 = scmp.lt.s32.totalorder %s12, 2
      // Predicated region
      $region21: #{tpu_custom_call.1} parent=5 // pred_check
        %p128 = pneg %p127
      $region22: #{tpu_custom_call.1} parent=5 // pred_check_branch
        %130 = sbr.rel (%p128) target = $region24
      $region23: #{tpu_custom_call.1} parent=5 // pred_region
        // Predicated region
        $region25: #{tpu_custom_call.1} parent=23 // pred_check
          %p131 = pneg %p32
        $region26: #{tpu_custom_call.1} parent=23 // pred_check_branch
          %133 = sbr.rel (%p131) target = $region28
        $region27: #{tpu_custom_call.1} parent=23 // pred_region
          %p134 = scmp.lt.s32.totalorder %s12, 1
          %s135 = scalar_select %p134, %s12, 1
          %s136 = smul.addr %s135, 2
          %s137 = smul.addr %s136, 8
          %s138 = scalar_lea.vmem %s0, %s137
        $region28: #{tpu_custom_call.1} parent=23 // pred_fallthru
          _
      $region24: #{tpu_custom_call.1} parent=5 // pred_fallthru
        _
      %p139 = scmp.le.s32.totalorder 1, %s12
      %p140 = scmp.lt.s32.totalorder %s12, 3
      %p141 = pnand %p139, %p140
      %p142 = pneg %p141
      // Predicated region
      $region29: #{tpu_custom_call.1} parent=5 // pred_check
        _
      $region30: #{tpu_custom_call.1} parent=5 // pred_check_branch
        %144 = sbr.rel (%p141) target = $region32
      $region31: #{tpu_custom_call.1} parent=5 // pred_region
        %s145 = ssub.s32 %s12, 1
        %p146 = scmp.lt.s32.totalorder %s17, 1
        %s147 = scalar_select %p146, %s17, 1
        %s148 = smul.addr %s147, 2
        %s149 = smul.addr %s148, 8
        %s150 = scalar_lea.vmem %s0, %s149
        %p151 = pneg %p38
        %p152 = pneg %p35
        %p153 = pneg %p59
        %p154 = pneg %p56
        %p155 = pneg %p80
        %p156 = pneg %p77
        %p157 = pneg %p106
        %p158 = pneg %p103
        %s159 = sand.u32 %s93, 1
        %s160 = scalar_lea.sflag [#allocation3], %s159
        %s161 = sand.u32 %s93, 1
        %s162 = smul.addr %s161, 16
        %s163 = scalar_lea.vmem [#allocation2], %s162
        %p164 = scmp.lt.s32.totalorder %s17, 1
        %s165 = scalar_select %p164, %s17, 1
        %s166 = smul.addr %s165, 2
        %s167 = smul.addr %s166, 8
        %s168 = scalar_lea.vmem %s0, %s167
        %v169 = vld [vmem:[%s168] sm:$0xff]
        %v170 = vld [vmem:[%s168 + $0x8] sm:$0xff]
        %v171 = vld [vmem:[%s1] sm:$0xff]
        %v172 = vld [vmem:[%s1 + $0x8] sm:$0xff]
        %v173 = vld [vmem:[%s1 + $0x10] sm:$0xff]
        %v174 = vld [vmem:[%s1 + $0x18] sm:$0xff]
        %v175 = vld [vmem:[%s1 + $0x20] sm:$0xff]
        %v176 = vld [vmem:[%s1 + $0x28] sm:$0xff]
        %v177 = vld [vmem:[%s2] sm:$0xff]
        %v178 = vld [vmem:[%s2 + $0x8] sm:$0xff]
        %vm179 = vcmask 392192
        %v181 = vsel %vm179, %v169, 0
        %v184 = vsel %vm179, %v170, 0
        %186 = vmatprep.subr.mxu0 0.0
        %187 = vmatpush1.msra.mxu0 %v171
        %188 = vmatprep.subr.mxu0 0.0
        %189 = vmatpush1.msra.mxu0 %v172
        %190 = vmatprep.subr.mxu0 0.0
        %191 = vmatpush1.msra.mxu0 %v173
        %192 = vmatprep.subr.mxu0 0.0
        %193 = vmatpush1.msra.mxu0 %v174
        %194 = vmatprep.subr.mxu0 0.0
        %195 = vmatpush1.msra.mxu0 %v175
        %196 = vmatprep.subr.mxu0 0.0
        %197 = vmatpush1.msra.mxu0 %v176
        %198 = vmatprep.subr.mxu0 0.0
        %199 = vmatpush1.msra.mxu0 0.0
        %200 = vmatprep.subr.mxu0 0.0
        %201 = vmatpush1.msra.mxu0 0.0
        %202 = vmatprep.subr.mxu0 0.0
        %203 = vmatpush1.msra.mxu0 0.0
        %204 = vmatprep.subr.mxu0 0.0
        %205 = vmatpush1.msra.mxu0 0.0
        %206 = vmatprep.subr.mxu0 0.0
        %207 = vmatpush1.msra.mxu0 0.0
        %208 = vmatprep.subr.mxu0 0.0
        %209 = vmatpush1.msra.mxu0 0.0
        %210 = vmatprep.subr.mxu0 0.0
        %211 = vmatpush1.msra.mxu0 0.0
        %212 = vmatprep.subr.mxu0 0.0
        %213 = vmatpush1.msra.mxu0 0.0
        %214 = vmatprep.subr.mxu0 0.0
        %215 = vmatpush1.msra.mxu0 0.0
        %216 = vmatprep.subr.mxu0 0.0
        %217 = vmatpush1.msra.mxu0 0.0
        %218 = vmatprep.subr.mxu0 0.0
        %219 = vmatpush1.msra.mxu0 0.0
        %220 = vmatprep.subr.mxu0 0.0
        %221 = vmatpush1.msra.mxu0 0.0
        %222 = vmatprep.subr.mxu0 0.0
        %223 = vmatpush1.msra.mxu0 0.0
        %224 = vmatprep.subr.mxu0 0.0
        %225 = vmatpush1.msra.mxu0 0.0
        %226 = vmatprep.subr.mxu0 0.0
        %227 = vmatpush1.msra.mxu0 0.0
        %228 = vmatprep.subr.mxu0 0.0
        %229 = vmatpush1.msra.mxu0 0.0
        %230 = vmatprep.subr.mxu0 0.0
        %231 = vmatpush1.msra.mxu0 0.0
        %232 = vmatprep.subr.mxu0 0.0
        %233 = vmatpush1.msra.mxu0 0.0
        %234 = vmatprep.subr.mxu0 0.0
        %235 = vmatpush1.msra.mxu0 0.0
        %236 = vmatprep.subr.mxu0 0.0
        %237 = vmatpush1.msra.mxu0 0.0
        %238 = vmatprep.subr.mxu0 0.0
        %239 = vmatpush1.msra.mxu0 0.0
        %240 = vmatprep.subr.mxu0 0.0
        %241 = vmatpush1.msra.mxu0 0.0
        %242 = vmatprep.subr.mxu0 0.0
        %243 = vmatpush1.msra.mxu0 0.0
        %244 = vmatprep.subr.mxu0 0.0
        %245 = vmatpush1.msra.mxu0 0.0
        %246 = vmatprep.subr.mxu0 0.0
        %247 = vmatpush1.msra.mxu0 0.0
        %248 = vmatprep.subr.mxu0 0.0
        %249 = vmatpush1.msra.mxu0 0.0
        %250 = vmatprep.mubr.f32.mxu0 0.0
        %251 = vmatmul.mubr.f32.gmra.mrb[0].mxu0 %v181
        %v252 = vpop.f32.mrb[0].mxu0
        %v253 = vadd.f32 %v177, %v252
        %v254 = vpop.f32.mrb[0].mxu0
        %255 = vmatprep.mubr.f32.mxu0 0.0
        %256 = vmatmul.mubr.f32.gmra.mrb[0].mxu0 %v184
        %v257 = vpop.f32.mrb[0].mxu0
        %v258 = vadd.f32 %v178, %v257
        %v259 = vpop.f32.mrb[0].mxu0
        %260 = vdwg.mxu0
        %vm261 = vcmask 261120
        %262 = vst.msk [vmem:[%s163] sm:$0xff] %vm261, %v253
        %263 = vst.msk [vmem:[%s163 + $0x8] sm:$0xff] %vm261, %v258
        %s264 = sand.u32 %s93, 1
        %s265 = scalar_lea.sflag [#allocation3], %s264
        %s266 = sand.u32 %s93, 1
        %s267 = smul.addr %s266, 16
        %s268 = scalar_lea.vmem [#allocation2], %s267
        // Predicated region
        $region33: #{tpu_custom_call.1} parent=31 // pred_check
          %p269 = pneg %p103
        $region34: #{tpu_custom_call.1} parent=31 // pred_check_branch
          %271 = sbr.rel (%p269) target = $region36
        $region35: #{tpu_custom_call.1} parent=31 // pred_region
          %s273 = ssub.s32 256, 256
          %274 = vsyncadd %s265, %s273
          %s275 = smul.addr %s17, 2
          %s276 = smul.addr %s275, 128
          %s277 = scalar_lea.hbm %s3, %s276
          %s278 = sshll.u32 %s268, 4
          %s279 = int_to_ptr.vmem [resolvable:$true] %s278
          %284 = dma.vmem_to_hbm [thread:$0]  %s279, 256, %s277, %s265, 128, 128, 8
        $region36: #{tpu_custom_call.1} parent=31 // pred_fallthru
          _
      $region32: #{tpu_custom_call.1} parent=5 // pred_fallthru
        _
      %p285 = scmp.le.s32.totalorder 2, %s12
      // Predicated region
      $region37: #{tpu_custom_call.1} parent=5 // pred_check
        %p286 = pneg %p285
      $region38: #{tpu_custom_call.1} parent=5 // pred_check_branch
        %288 = sbr.rel (%p286) target = $region40
      $region39: #{tpu_custom_call.1} parent=5 // pred_region
        %s289 = ssub.s32 %s12, 2
        // Predicated region
        $region41: #{tpu_custom_call.1} parent=39 // pred_check
          %p290 = pneg %p109
        $region42: #{tpu_custom_call.1} parent=39 // pred_check_branch
          %292 = sbr.rel (%p290) target = $region44
        $region43: #{tpu_custom_call.1} parent=39 // pred_region
          %s293 = sand.u32 %s94, 1
          %s294 = scalar_lea.sflag [#allocation3], %s293
          %s295 = sand.u32 %s94, 1
          %s296 = smul.addr %s295, 16
          %s297 = scalar_lea.vmem [#allocation2], %s296
          %298 = dma.done %s294, 256
        $region44: #{tpu_custom_call.1} parent=39 // pred_fallthru
          _
      $region40: #{tpu_custom_call.1} parent=5 // pred_fallthru
        _
    $region6: #{tpu_custom_call.1} parent=1 // loop_footer
      %s16 = sadd.s32 1, %s12
    $region7: #{tpu_custom_call.1} parent=1 // loop_footer_branch
      %11 = sbr.rel target = $region3
    $region8: #{tpu_custom_call.1} parent=1 // loop_exit
      _
    %299 = vsyncpa [#allocation3], 1
    %s300 = scalar_lea.sflag [#allocation3], 1
    %301 = vsyncpa %s300, 1

</llo_original>
